<compile_context>
chip_gen: v5e
topology: v5e:2x2
jax: 0.10.0
libtpu: 0.0.40
codegen_flags: <defaults>
</compile_context>

<pallas_src>
import jax
import jax.numpy as jnp
from jax.experimental import pallas as pl
from jax.experimental.pallas import tpu as pltpu

IN_FEATURES = 768
OUT_FEATURES = 6
TM_MAX = 2048          # 2048*768*4 B = 6 MiB per x buffer, x2 buffers = 12 MiB
SMALL_B_THRESHOLD = 1024  # below this, fused XLA matmul beats a pallas_call launch


def _linear_kernel(x_ref, w_ref, b_ref, o_ref):
    # x_ref: (tm, 768), w_ref: (768, 6), b_ref: (1, 6), o_ref: (tm, 6)
    # Single MXU matmul with f32 accumulation, bias broadcast-add, narrow store
    # (output bytes are <1% of traffic; the x stream is the roofline).
    acc = jnp.dot(x_ref[...], w_ref[...], preferred_element_type=jnp.float32)
    o_ref[...] = (acc + b_ref[...]).astype(o_ref.dtype)


def _round_up(v, m):
    return ((v + m - 1) // m) * m


def prepare_params(w, b):
    """One-time param prep: (6, 768) weight -> (768, 6), bias -> (1, 6)."""
    return w.T.astype(jnp.float32), b.astype(jnp.float32).reshape(1, OUT_FEATURES)


def bert_nn_forward(x, w_t, b2d, *, force_pallas=False):
    """x: (B, 1, 768) f32, w_t: (768, 6) f32, b2d: (1, 6) f32 -> (B, 6) f32."""
    x2d = x.reshape(x.shape[0], IN_FEATURES)          # x.squeeze(1)
    B = x2d.shape[0]

    if not force_pallas and B < SMALL_B_THRESHOLD:
        # Tiny batch: launch overhead dwarfs the work; let XLA fuse everything.
        return x2d @ w_t + b2d[0]

    # Row-tile choice:
    #  - at least 2 grid steps when possible so v7x's two TensorCores both
    #    get work via the "parallel" batch axis,
    #  - capped at TM_MAX to stay inside scoped VMEM with double buffering.
    b8 = _round_up(B, 8)
    if b8 <= TM_MAX:
        tm = max(8, _round_up(pl.cdiv(b8, 2), 8))
    else:
        tm = TM_MAX
    grid = (pl.cdiv(B, tm),)

    out = pl.pallas_call(
        _linear_kernel,
        out_shape=jax.ShapeDtypeStruct((B, OUT_FEATURES), jnp.float32),
        grid_spec=pltpu.PrefetchScalarGridSpec(
            num_scalar_prefetch=0,
            grid=grid,
            in_specs=[
                pl.BlockSpec((tm, IN_FEATURES), lambda i: (i, 0)),          # x tile (streamed)
                pl.BlockSpec((IN_FEATURES, OUT_FEATURES), lambda i: (0, 0)),  # W resident
                pl.BlockSpec((1, OUT_FEATURES), lambda i: (0, 0)),            # bias resident
            ],
            out_specs=pl.BlockSpec((tm, OUT_FEATURES), lambda i: (i, 0)),
        ),
        compiler_params=pltpu.CompilerParams(
            dimension_semantics=("parallel",),          # shard batch tiles across TCs
            vmem_limit_bytes=32 * 1024 * 1024,          # headroom for v5e's 16 MiB default
        ),
    )(x2d, w_t, b2d)

    return out


def init_params(key):
    """Deterministic synthetic init matching torch.nn.Linear(768, 6) shapes."""
    kw, kb = jax.random.split(key)
    bound = 1.0 / (IN_FEATURES ** 0.5)
    w = jax.random.uniform(kw, (OUT_FEATURES, IN_FEATURES),
                           minval=-bound, maxval=bound, dtype=jnp.float32)
    b = jax.random.uniform(kb, (OUT_FEATURES,),
                           minval=-bound, maxval=bound, dtype=jnp.float32)
    return w, b


if __name__ == "__main__":
    key = jax.random.PRNGKey(0)
    k_params, k_x = jax.random.split(key)

    w, b = init_params(k_params)             # w: (6, 768), b: (6,)
    w_t, b2d = prepare_params(w, b)          # one-time param prep

    B = 8
    x = jax.random.normal(k_x, (B, 1, IN_FEATURES), dtype=jnp.float32)

    out = bert_nn_forward(x, w_t, b2d, force_pallas=True)
    out = jax.block_until_ready(out)

    # Correctness check against plain-JAX reference of the PyTorch forward.
    ref = x.reshape(B, IN_FEATURES) @ w.T + b
    assert out.shape == (B, OUT_FEATURES)
    assert jnp.allclose(out, ref, atol=2e-2, rtol=2e-2), \
        f"max abs diff {jnp.max(jnp.abs(out - ref))}"

    print("KERNEL_OK")
</pallas_src>

<mosaic_0001>
module attributes {stable_mosaic.version = 11 : i64} {
  func.func @_linear_kernel(%arg0: i32, %arg1: memref<8x768xf32, #tpu.memory_space<vmem>>, %arg2: memref<768x6xf32, #tpu.memory_space<vmem>>, %arg3: memref<1x6xf32, #tpu.memory_space<vmem>>, %arg4: memref<8x6xf32, #tpu.memory_space<vmem>>) attributes {dimension_semantics = [#tpu.dimension_semantics<parallel>], iteration_bounds = array<i64: 1>, scalar_prefetch = 0 : i64, scratch_operands = 0 : i64, tpu.core_type = #tpu.core_type<tc>, window_params = [{transform_indices = @transform_0, window_bounds = array<i64: 8, 768>}, {pipeline_mode = #tpu.pipeline_mode<synchronous>, transform_indices = @transform_1, window_bounds = array<i64: 768, 6>}, {pipeline_mode = #tpu.pipeline_mode<synchronous>, transform_indices = @transform_2, window_bounds = array<i64: 1, 6>}, {transform_indices = @transform_3, window_bounds = array<i64: 8, 6>}]} {
    %c0 = arith.constant 0 : index
    %c0_0 = arith.constant 0 : index
    %0 = vector.load %arg1[%c0, %c0_0] : memref<8x768xf32, #tpu.memory_space<vmem>>, vector<8x768xf32>
    %c0_1 = arith.constant 0 : index
    %c0_2 = arith.constant 0 : index
    %1 = vector.load %arg2[%c0_1, %c0_2] : memref<768x6xf32, #tpu.memory_space<vmem>>, vector<768x6xf32>
    %cst = arith.constant dense<0.000000e+00> : vector<8x6xf32>
    %2 = tpu.matmul %0, %1, %cst {dimension_numbers = #tpu.dot_dimension_numbers<[1], [0], [0], [1], [0, 0, 1, 1], [], []>} : vector<8x768xf32>, vector<768x6xf32>, vector<8x6xf32> -> vector<8x6xf32>
    %c0_3 = arith.constant 0 : index
    %c0_4 = arith.constant 0 : index
    %3 = vector.load %arg3[%c0_3, %c0_4] : memref<1x6xf32, #tpu.memory_space<vmem>>, vector<1x6xf32>
    %4 = vector.broadcast %3 : vector<1x6xf32> to vector<8x6xf32>
    %5 = arith.addf %2, %4 : vector<8x6xf32>
    %c0_5 = arith.constant 0 : index
    %c0_6 = arith.constant 0 : index
    %6 = vector.load %arg4[%c0_5, %c0_6] : memref<8x6xf32, #tpu.memory_space<vmem>>, vector<8x6xf32>
    tpu.vector_store %arg4[%c0_5, %c0_6], %5 {strides = array<i32>} : memref<8x6xf32, #tpu.memory_space<vmem>>, vector<8x6xf32>,
    return
  }
  func.func @transform_0(%arg0: i32) -> (i32, i32) {
    %c0_i32 = arith.constant 0 : i32
    %c0_i32_0 = arith.constant 0 : i32
    return %arg0, %c0_i32 : i32, i32
  }
  func.func @transform_1(%arg0: i32) -> (i32, i32) {
    %c0_i32 = arith.constant 0 : i32
    %c0_i32_0 = arith.constant 0 : i32
    %c0_i32_1 = arith.constant 0 : i32
    return %c0_i32, %c0_i32_0 : i32, i32
  }
  func.func @transform_2(%arg0: i32) -> (i32, i32) {
    %c0_i32 = arith.constant 0 : i32
    %c0_i32_0 = arith.constant 0 : i32
    %c0_i32_1 = arith.constant 0 : i32
    return %c0_i32, %c0_i32_0 : i32, i32
  }
  func.func @transform_3(%arg0: i32) -> (i32, i32) {
    %c0_i32 = arith.constant 0 : i32
    %c0_i32_0 = arith.constant 0 : i32
    return %arg0, %c0_i32 : i32, i32
  }
}

</mosaic_0001>

<llo_original>
// kernel: tpu_custom_call.1
$region0: #{tpu_custom_call.1}
  #allocation0 [shape = 'u32[]', space=smem, size = 0x4, offset = 0x4, fixed_abs, tag = 'smem constant byte address 0x4 - core index']
  #allocation1 [shape = 'u32[72,128]{1,0:T(1,128)}', space=vmem, size = 0x9000, scoped, tag = 'internal scratch']
  %s0 = inlined_call_operand.vmem [shape: f32[8,768], index: 0, kind: input, shape index: {}]
  %s1 = inlined_call_operand.vmem [shape: f32[768,6], index: 1, kind: input, shape index: {}]
  %s2 = inlined_call_operand.vmem [shape: f32[1,6], index: 2, kind: input, shape index: {}]
  %s3 = inlined_call_operand.hbm [shape: f32[8,6], index: 3, kind: output, shape index: {}]
  %s4 = sld [smem:[#allocation0]]
  $region22: #{tpu_custom_call.1} parent=0
    _
  %s6 = ssub.s32 1, %s4
  %s7 = scalar_select 0, %s6, %s4
  $region1: #{tpu_custom_call.1} parent=0
    #allocation2 [shape = 'u8[4096]{0}', space=vmem, size = 0x1000, scoped, tag = 'output window, operand 0, single buffered']
    #allocation3 [shape = 's32[1]{0}', space=sflag, size = 0x4, scoped, tag = 'scoped memory for tpu_custom_call.1']
    %8 = vsyncpa [#allocation3], 0
    // Predicated region
    $region2: #{tpu_custom_call.1} parent=1 // pred_check
      _
    $region3: #{tpu_custom_call.1} parent=1 // pred_check_branch
      %10 = sbr.rel (0) target = $region5
    $region4: #{tpu_custom_call.1} parent=1 // pred_region
      _
    $region5: #{tpu_custom_call.1} parent=1 // pred_fallthru
      _
    // Predicated region
    $region6: #{tpu_custom_call.1} parent=1 // pred_check
      _
    $region7: #{tpu_custom_call.1} parent=1 // pred_check_branch
      %12 = sbr.rel (0) target = $region9
    $region8: #{tpu_custom_call.1} parent=1 // pred_region
      _
    $region9: #{tpu_custom_call.1} parent=1 // pred_fallthru
      _
    // Predicated region
    $region10: #{tpu_custom_call.1} parent=1 // pred_check
      _
    $region11: #{tpu_custom_call.1} parent=1 // pred_check_branch
      %14 = sbr.rel (0) target = $region13
    $region12: #{tpu_custom_call.1} parent=1 // pred_region
      _
    $region13: #{tpu_custom_call.1} parent=1 // pred_fallthru
      _
    %v15 = vld [vmem:[%s0] sm:$0xff]
    %v16 = vld [vmem:[%s0 + $0x8] sm:$0xff]
    %v17 = vld [vmem:[%s0 + $0x10] sm:$0xff]
    %v18 = vld [vmem:[%s0 + $0x18] sm:$0xff]
    %v19 = vld [vmem:[%s0 + $0x20] sm:$0xff]
    %v20 = vld [vmem:[%s0 + $0x28] sm:$0xff]
    %v21 = vld [vmem:[%s1] sm:$0xff]
    %v22 = vld [vmem:[%s1 + $0x8] sm:$0xff]
    %v23 = vld [vmem:[%s1 + $0x10] sm:$0xff]
    %v24 = vld [vmem:[%s1 + $0x18] sm:$0xff]
    %v25 = vld [vmem:[%s1 + $0x20] sm:$0xff]
    %v26 = vld [vmem:[%s1 + $0x28] sm:$0xff]
    %v27 = vld [vmem:[%s1 + $0x30] sm:$0xff]
    %v28 = vld [vmem:[%s1 + $0x38] sm:$0xff]
    %v29 = vld [vmem:[%s1 + $0x40] sm:$0xff]
    %v30 = vld [vmem:[%s1 + $0x48] sm:$0xff]
    %v31 = vld [vmem:[%s1 + $0x50] sm:$0xff]
    %v32 = vld [vmem:[%s1 + $0x58] sm:$0xff]
    %v33 = vld [vmem:[%s1 + $0x60] sm:$0xff]
    %v34 = vld [vmem:[%s1 + $0x68] sm:$0xff]
    %v35 = vld [vmem:[%s1 + $0x70] sm:$0xff]
    %v36 = vld [vmem:[%s1 + $0x78] sm:$0xff]
    %v37 = vld [vmem:[%s1 + $0x80] sm:$0xff]
    %v38 = vld [vmem:[%s1 + $0x88] sm:$0xff]
    %v39 = vld [vmem:[%s1 + $0x90] sm:$0xff]
    %v40 = vld [vmem:[%s1 + $0x98] sm:$0xff]
    %v41 = vld [vmem:[%s1 + $0xa0] sm:$0xff]
    %v42 = vld [vmem:[%s1 + $0xa8] sm:$0xff]
    %v43 = vld [vmem:[%s1 + $0xb0] sm:$0xff]
    %v44 = vld [vmem:[%s1 + $0xb8] sm:$0xff]
    %v45 = vld [vmem:[%s1 + $0xc0] sm:$0xff]
    %v46 = vld [vmem:[%s1 + $0xc8] sm:$0xff]
    %v47 = vld [vmem:[%s1 + $0xd0] sm:$0xff]
    %v48 = vld [vmem:[%s1 + $0xd8] sm:$0xff]
    %v49 = vld [vmem:[%s1 + $0xe0] sm:$0xff]
    %v50 = vld [vmem:[%s1 + $0xe8] sm:$0xff]
    %v51 = vld [vmem:[%s1 + $0xf0] sm:$0xff]
    %v52 = vld [vmem:[%s1 + $0xf8] sm:$0xff]
    %v53 = vld [vmem:[%s1 + $0x100] sm:$0xff]
    %v54 = vld [vmem:[%s1 + $0x108] sm:$0xff]
    %v55 = vld [vmem:[%s1 + $0x110] sm:$0xff]
    %v56 = vld [vmem:[%s1 + $0x118] sm:$0xff]
    %v57 = vld [vmem:[%s1 + $0x120] sm:$0xff]
    %v58 = vld [vmem:[%s1 + $0x128] sm:$0xff]
    %v59 = vld [vmem:[%s1 + $0x130] sm:$0xff]
    %v60 = vld [vmem:[%s1 + $0x138] sm:$0xff]
    %v61 = vld [vmem:[%s1 + $0x140] sm:$0xff]
    %v62 = vld [vmem:[%s1 + $0x148] sm:$0xff]
    %v63 = vld [vmem:[%s1 + $0x150] sm:$0xff]
    %v64 = vld [vmem:[%s1 + $0x158] sm:$0xff]
    %v65 = vld [vmem:[%s1 + $0x160] sm:$0xff]
    %v66 = vld [vmem:[%s1 + $0x168] sm:$0xff]
    %v67 = vld [vmem:[%s1 + $0x170] sm:$0xff]
    %v68 = vld [vmem:[%s1 + $0x178] sm:$0xff]
    %v69 = vld [vmem:[%s1 + $0x180] sm:$0xff]
    %v70 = vld [vmem:[%s1 + $0x188] sm:$0xff]
    %v71 = vld [vmem:[%s1 + $0x190] sm:$0xff]
    %v72 = vld [vmem:[%s1 + $0x198] sm:$0xff]
    %v73 = vld [vmem:[%s1 + $0x1a0] sm:$0xff]
    %v74 = vld [vmem:[%s1 + $0x1a8] sm:$0xff]
    %v75 = vld [vmem:[%s1 + $0x1b0] sm:$0xff]
    %v76 = vld [vmem:[%s1 + $0x1b8] sm:$0xff]
    %v77 = vld [vmem:[%s1 + $0x1c0] sm:$0xff]
    %v78 = vld [vmem:[%s1 + $0x1c8] sm:$0xff]
    %v79 = vld [vmem:[%s1 + $0x1d0] sm:$0xff]
    %v80 = vld [vmem:[%s1 + $0x1d8] sm:$0xff]
    %v81 = vld [vmem:[%s1 + $0x1e0] sm:$0xff]
    %v82 = vld [vmem:[%s1 + $0x1e8] sm:$0xff]
    %v83 = vld [vmem:[%s1 + $0x1f0] sm:$0xff]
    %v84 = vld [vmem:[%s1 + $0x1f8] sm:$0xff]
    %v85 = vld [vmem:[%s1 + $0x200] sm:$0xff]
    %v86 = vld [vmem:[%s1 + $0x208] sm:$0xff]
    %v87 = vld [vmem:[%s1 + $0x210] sm:$0xff]
    %v88 = vld [vmem:[%s1 + $0x218] sm:$0xff]
    %v89 = vld [vmem:[%s1 + $0x220] sm:$0xff]
    %v90 = vld [vmem:[%s1 + $0x228] sm:$0xff]
    %v91 = vld [vmem:[%s1 + $0x230] sm:$0xff]
    %v92 = vld [vmem:[%s1 + $0x238] sm:$0xff]
    %v93 = vld [vmem:[%s1 + $0x240] sm:$0xff]
    %v94 = vld [vmem:[%s1 + $0x248] sm:$0xff]
    %v95 = vld [vmem:[%s1 + $0x250] sm:$0xff]
    %v96 = vld [vmem:[%s1 + $0x258] sm:$0xff]
    %v97 = vld [vmem:[%s1 + $0x260] sm:$0xff]
    %v98 = vld [vmem:[%s1 + $0x268] sm:$0xff]
    %v99 = vld [vmem:[%s1 + $0x270] sm:$0xff]
    %v100 = vld [vmem:[%s1 + $0x278] sm:$0xff]
    %v101 = vld [vmem:[%s1 + $0x280] sm:$0xff]
    %v102 = vld [vmem:[%s1 + $0x288] sm:$0xff]
    %v103 = vld [vmem:[%s1 + $0x290] sm:$0xff]
    %v104 = vld [vmem:[%s1 + $0x298] sm:$0xff]
    %v105 = vld [vmem:[%s1 + $0x2a0] sm:$0xff]
    %v106 = vld [vmem:[%s1 + $0x2a8] sm:$0xff]
    %v107 = vld [vmem:[%s1 + $0x2b0] sm:$0xff]
    %v108 = vld [vmem:[%s1 + $0x2b8] sm:$0xff]
    %v109 = vld [vmem:[%s1 + $0x2c0] sm:$0xff]
    %v110 = vld [vmem:[%s1 + $0x2c8] sm:$0xff]
    %v111 = vld [vmem:[%s1 + $0x2d0] sm:$0xff]
    %v112 = vld [vmem:[%s1 + $0x2d8] sm:$0xff]
    %v113 = vld [vmem:[%s1 + $0x2e0] sm:$0xff]
    %v114 = vld [vmem:[%s1 + $0x2e8] sm:$0xff]
    %v115 = vld [vmem:[%s1 + $0x2f0] sm:$0xff]
    %v116 = vld [vmem:[%s1 + $0x2f8] sm:$0xff]
    %v117 = vld [vmem:[%s2] sm:$0x1]
    %v119 = vperm.slane %v117, 0
    %121 = vmatpush.msra.mxu0 %v36
    %122 = vmatpush.msra.mxu0 %v35
    %123 = vmatpush.msra.mxu0 %v34
    %124 = vmatpush.msra.mxu0 %v33
    %125 = vmatpush.msra.mxu0 %v32
    %126 = vmatpush.msra.mxu0 %v31
    %127 = vmatpush.msra.mxu0 %v30
    %128 = vmatpush.msra.mxu0 %v29
    %129 = vmatpush.msra.mxu0 %v28
    %130 = vmatpush.msra.mxu0 %v27
    %131 = vmatpush.msra.mxu0 %v26
    %132 = vmatpush.msra.mxu0 %v25
    %133 = vmatpush.msra.mxu0 %v24
    %134 = vmatpush.msra.mxu0 %v23
    %135 = vmatpush.msra.mxu0 %v22
    %136 = vmatpush.msra.mxu0 %v21
    %137 = vmatmul.f32.gmra.mxu0 %v15
    %v138 = vpop.f32.mrf.mxu0
    %v139 = vadd.f32 %v119, %v138
    %140 = vdwg.mxu0
    %141 = vmatpush.msra.mxu0 %v52
    %142 = vmatpush.msra.mxu0 %v51
    %143 = vmatpush.msra.mxu0 %v50
    %144 = vmatpush.msra.mxu0 %v49
    %145 = vmatpush.msra.mxu0 %v48
    %146 = vmatpush.msra.mxu0 %v47
    %147 = vmatpush.msra.mxu0 %v46
    %148 = vmatpush.msra.mxu0 %v45
    %149 = vmatpush.msra.mxu0 %v44
    %150 = vmatpush.msra.mxu0 %v43
    %151 = vmatpush.msra.mxu0 %v42
    %152 = vmatpush.msra.mxu0 %v41
    %153 = vmatpush.msra.mxu0 %v40
    %154 = vmatpush.msra.mxu0 %v39
    %155 = vmatpush.msra.mxu0 %v38
    %156 = vmatpush.msra.mxu0 %v37
    %157 = vmatmul.f32.gmra.mxu0 %v16
    %v158 = vpop.f32.mrf.mxu0
    %v159 = vadd.f32 %v139, %v158
    %160 = vdwg.mxu0
    %161 = vmatpush.msra.mxu0 %v68
    %162 = vmatpush.msra.mxu0 %v67
    %163 = vmatpush.msra.mxu0 %v66
    %164 = vmatpush.msra.mxu0 %v65
    %165 = vmatpush.msra.mxu0 %v64
    %166 = vmatpush.msra.mxu0 %v63
    %167 = vmatpush.msra.mxu0 %v62
    %168 = vmatpush.msra.mxu0 %v61
    %169 = vmatpush.msra.mxu0 %v60
    %170 = vmatpush.msra.mxu0 %v59
    %171 = vmatpush.msra.mxu0 %v58
    %172 = vmatpush.msra.mxu0 %v57
    %173 = vmatpush.msra.mxu0 %v56
    %174 = vmatpush.msra.mxu0 %v55
    %175 = vmatpush.msra.mxu0 %v54
    %176 = vmatpush.msra.mxu0 %v53
    %177 = vmatmul.f32.gmra.mxu0 %v17
    %v178 = vpop.f32.mrf.mxu0
    %v179 = vadd.f32 %v159, %v178
    %180 = vdwg.mxu0
    %181 = vmatpush.msra.mxu0 %v84
    %182 = vmatpush.msra.mxu0 %v83
    %183 = vmatpush.msra.mxu0 %v82
    %184 = vmatpush.msra.mxu0 %v81
    %185 = vmatpush.msra.mxu0 %v80
    %186 = vmatpush.msra.mxu0 %v79
    %187 = vmatpush.msra.mxu0 %v78
    %188 = vmatpush.msra.mxu0 %v77
    %189 = vmatpush.msra.mxu0 %v76
    %190 = vmatpush.msra.mxu0 %v75
    %191 = vmatpush.msra.mxu0 %v74
    %192 = vmatpush.msra.mxu0 %v73
    %193 = vmatpush.msra.mxu0 %v72
    %194 = vmatpush.msra.mxu0 %v71
    %195 = vmatpush.msra.mxu0 %v70
    %196 = vmatpush.msra.mxu0 %v69
    %197 = vmatmul.f32.gmra.mxu0 %v18
    %v198 = vpop.f32.mrf.mxu0
    %v199 = vadd.f32 %v179, %v198
    %200 = vdwg.mxu0
    %201 = vmatpush.msra.mxu0 %v100
    %202 = vmatpush.msra.mxu0 %v99
    %203 = vmatpush.msra.mxu0 %v98
    %204 = vmatpush.msra.mxu0 %v97
    %205 = vmatpush.msra.mxu0 %v96
    %206 = vmatpush.msra.mxu0 %v95
    %207 = vmatpush.msra.mxu0 %v94
    %208 = vmatpush.msra.mxu0 %v93
    %209 = vmatpush.msra.mxu0 %v92
    %210 = vmatpush.msra.mxu0 %v91
    %211 = vmatpush.msra.mxu0 %v90
    %212 = vmatpush.msra.mxu0 %v89
    %213 = vmatpush.msra.mxu0 %v88
    %214 = vmatpush.msra.mxu0 %v87
    %215 = vmatpush.msra.mxu0 %v86
    %216 = vmatpush.msra.mxu0 %v85
    %217 = vmatmul.f32.gmra.mxu0 %v19
    %v218 = vpop.f32.mrf.mxu0
    %v219 = vadd.f32 %v199, %v218
    %220 = vdwg.mxu0
    %221 = vmatpush.msra.mxu0 %v116
    %222 = vmatpush.msra.mxu0 %v115
    %223 = vmatpush.msra.mxu0 %v114
    %224 = vmatpush.msra.mxu0 %v113
    %225 = vmatpush.msra.mxu0 %v112
    %226 = vmatpush.msra.mxu0 %v111
    %227 = vmatpush.msra.mxu0 %v110
    %228 = vmatpush.msra.mxu0 %v109
    %229 = vmatpush.msra.mxu0 %v108
    %230 = vmatpush.msra.mxu0 %v107
    %231 = vmatpush.msra.mxu0 %v106
    %232 = vmatpush.msra.mxu0 %v105
    %233 = vmatpush.msra.mxu0 %v104
    %234 = vmatpush.msra.mxu0 %v103
    %235 = vmatpush.msra.mxu0 %v102
    %236 = vmatpush.msra.mxu0 %v101
    %237 = vmatmul.f32.gmra.mxu0 %v20
    %v238 = vpop.f32.mrf.mxu0
    %v239 = vadd.f32 %v219, %v238
    %240 = vdwg.mxu0
    %vm241 = vcmask 48128
    %242 = vst.msk [vmem:[#allocation2] sm:$0xff] %vm241, %v239
    // Predicated region
    $region14: #{tpu_custom_call.1} parent=1 // pred_check
      _
    $region15: #{tpu_custom_call.1} parent=1 // pred_check_branch
      %244 = sbr.rel (0) target = $region17
    $region16: #{tpu_custom_call.1} parent=1 // pred_region
      %246 = vsyncadd [#allocation3], 0
      %s248 = sshll.u32 [#allocation2], 4
      %s249 = int_to_ptr.vmem [resolvable:$true] %s248
      %s250 = sshll.u32 %s3, 4
      %s251 = int_to_ptr.hbm [resolvable:$true] %s250
      %253 = dma.vmem_to_hbm [thread:$0]  %s249, 128, %s251, [#allocation3]
    $region17: #{tpu_custom_call.1} parent=1 // pred_fallthru
      _
    // Predicated region
    $region18: #{tpu_custom_call.1} parent=1 // pred_check
      _
    $region19: #{tpu_custom_call.1} parent=1 // pred_check_branch
      %255 = sbr.rel (0) target = $region21
    $region20: #{tpu_custom_call.1} parent=1 // pred_region
      %257 = dma.done [#allocation3], 128
    $region21: #{tpu_custom_call.1} parent=1 // pred_fallthru
      _
    %258 = vsyncpa [#allocation3], 1

</llo_original>
